<compile_context>
chip_gen: v7x
topology: tpu7x:2x2x1
jax: 0.10.0
libtpu: 0.0.40
codegen_flags: <defaults>
</compile_context>

<pallas_src>
import math

import jax
import jax.numpy as jnp
from jax.experimental import pallas as pl
from jax.experimental.pallas import tpu as pltpu


def make_sinusoidal_pe(max_len, d_model, dtype=jnp.float32):
    """Same table as the PyTorch __init__ (register_buffer 'pe')."""
    assert d_model % 2 == 0, "d_model must be even (matches the PyTorch buffer init)"
    position = jnp.arange(max_len, dtype=jnp.float32)[:, None]          # [L, 1]
    div_term = jnp.exp(
        jnp.arange(0, d_model, 2, dtype=jnp.float32) * (-math.log(10000.0) / d_model)
    )                                                                    # [D/2]
    pe = jnp.zeros((max_len, d_model), jnp.float32)
    pe = pe.at[:, 0::2].set(jnp.sin(position * div_term))
    pe = pe.at[:, 1::2].set(jnp.cos(position * div_term))
    return pe.astype(dtype)


def _pe_add_kernel(x_ref, pe_ref, out_ref):
    """x_ref/out_ref: (1, ts, K, T); pe_ref: (1, ts, K, 1).  Lane-broadcast add."""
    x = x_ref[...]
    pe = pe_ref[...].astype(x.dtype)          # (1, ts, K, 1) broadcasts over T (lanes)
    out_ref[...] = (x + pe).astype(out_ref.dtype)


def _pe_cat_kernel(x_ref, pe_ref, out_ref):
    """x_ref: (1, ts, K, T); pe_ref: (1, ts, D, 1); out_ref: (1, ts, K+D, T)."""
    _, ts, D, _ = pe_ref.shape
    T = x_ref.shape[-1]
    x = x_ref[...].astype(out_ref.dtype)
    pe_b = jnp.broadcast_to(pe_ref[...], (1, ts, D, T)).astype(out_ref.dtype)
    # Single full-block (sublane) concat -> one lane-dense, unmasked store.
    out_ref[...] = jnp.concatenate([x, pe_b], axis=2)


def _pick_s_tile(S, B, row_bytes, budget_bytes=2 << 20, min_steps=8):
    """Largest divisor of S whose block fits the VMEM budget; prefer divisors that
    still expose >= min_steps grid steps (pipelining depth / dual-TC on v7x)."""
    max_rows = max(1, budget_bytes // max(1, row_bytes))
    divisors = [d for d in range(1, S + 1) if S % d == 0 and d <= max_rows]
    if not divisors:
        return 1
    good = [d for d in divisors if (B * (S // d)) >= min_steps]
    return max(good) if good else max(divisors)


def positional_encoding(x, pe, mode="add"):
    """x: [B, S, K, T]; pe: [max_len, d_model]; mode in {'add', 'cat'}."""
    assert x.ndim == 4, "dimension of input not supported"
    assert mode in ("add", "cat")
    B, S, K, T = x.shape
    max_len, D = pe.shape
    assert S <= max_len, "n_step exceeds max_len"

    # pe[:n_step].unsqueeze(0).unsqueeze(-1) -> [1, S, D, 1]
    pe_s = pe[:S].reshape(1, S, D, 1)

    ts = _pick_s_tile(S, B, K * T * x.dtype.itemsize)
    grid = (B, S // ts)

    x_spec = pl.BlockSpec((1, ts, K, T), lambda b, s: (b, s, 0, 0))
    pe_spec = pl.BlockSpec((1, ts, D, 1), lambda b, s: (0, s, 0, 0))

    if mode == "add":
        assert K == D, "dimension of model mismatch"
        kernel = _pe_add_kernel
        out_shape = jax.ShapeDtypeStruct((B, S, K, T), x.dtype)
        out_spec = pl.BlockSpec((1, ts, K, T), lambda b, s: (b, s, 0, 0))
    else:  # 'cat'
        kernel = _pe_cat_kernel
        out_dtype = jnp.result_type(x.dtype, pe.dtype)
        out_shape = jax.ShapeDtypeStruct((B, S, K + D, T), out_dtype)
        out_spec = pl.BlockSpec((1, ts, K + D, T), lambda b, s: (b, s, 0, 0))

    return pl.pallas_call(
        kernel,
        out_shape=out_shape,
        grid_spec=pl.GridSpec(
            grid=grid,
            in_specs=[x_spec, pe_spec],
            out_specs=out_spec,
        ),
        compiler_params=pltpu.CompilerParams(
            dimension_semantics=("parallel", "parallel"),
        ),
    )(x, pe_s)


if __name__ == "__main__":
    key = jax.random.PRNGKey(0)

    # x: [B, S, K, T] with K == d_model
    B, S, K, T = 2, 16, 8, 32
    max_len, d_model = 64, K

    x = jax.random.normal(key, (B, S, K, T), dtype=jnp.float32)
    pe = make_sinusoidal_pe(max_len, d_model)

    # --- mode='add' (module default) ---
    out_add = jax.block_until_ready(positional_encoding(x, pe, mode="add"))
    ref_add = x + pe[:S][None, :, :, None]
    assert out_add.shape == (B, S, K, T)
    assert jnp.allclose(out_add, ref_add, atol=1e-6, rtol=1e-6), "add-mode mismatch"

    # --- mode='cat' ---
    out_cat = jax.block_until_ready(positional_encoding(x, pe, mode="cat"))
    pe_exp = jnp.broadcast_to(pe[:S][None, :, :, None], (B, S, d_model, T))
    ref_cat = jnp.concatenate([x, pe_exp], axis=2)
    assert out_cat.shape == (B, S, K + d_model, T)
    assert jnp.allclose(out_cat, ref_cat, atol=1e-6, rtol=1e-6), "cat-mode mismatch"

    print("KERNEL_OK")
</pallas_src>

<mosaic_0001>
module attributes {stable_mosaic.version = 11 : i64} {
  func.func @_pe_add_kernel(%arg0: i32, %arg1: i32, %arg2: memref<1x4x8x32xf32, #tpu.memory_space<vmem>>, %arg3: memref<1x4x8x1xf32, #tpu.memory_space<vmem>>, %arg4: memref<1x4x8x32xf32, #tpu.memory_space<vmem>>) attributes {dimension_semantics = [#tpu.dimension_semantics<parallel>, #tpu.dimension_semantics<parallel>], iteration_bounds = array<i64: 2, 4>, scalar_prefetch = 0 : i64, scratch_operands = 0 : i64, tpu.core_type = #tpu.core_type<tc>, window_params = [{transform_indices = @transform_0, window_bounds = array<i64: 1, 4, 8, 32>}, {transform_indices = @transform_1, window_bounds = array<i64: 1, 4, 8, 1>}, {transform_indices = @transform_2, window_bounds = array<i64: 1, 4, 8, 32>}]} {
    %c0 = arith.constant 0 : index
    %c0_0 = arith.constant 0 : index
    %c0_1 = arith.constant 0 : index
    %c0_2 = arith.constant 0 : index
    %0 = vector.load %arg2[%c0, %c0_0, %c0_1, %c0_2] : memref<1x4x8x32xf32, #tpu.memory_space<vmem>>, vector<1x4x8x32xf32>
    %c0_3 = arith.constant 0 : index
    %c0_4 = arith.constant 0 : index
    %c0_5 = arith.constant 0 : index
    %c0_6 = arith.constant 0 : index
    %1 = vector.load %arg3[%c0_3, %c0_4, %c0_5, %c0_6] : memref<1x4x8x1xf32, #tpu.memory_space<vmem>>, vector<1x4x8x1xf32>
    %2 = vector.broadcast %1 : vector<1x4x8x1xf32> to vector<1x4x8x32xf32>
    %3 = arith.addf %0, %2 : vector<1x4x8x32xf32>
    %c0_7 = arith.constant 0 : index
    %c0_8 = arith.constant 0 : index
    %c0_9 = arith.constant 0 : index
    %c0_10 = arith.constant 0 : index
    %4 = vector.load %arg4[%c0_7, %c0_8, %c0_9, %c0_10] : memref<1x4x8x32xf32, #tpu.memory_space<vmem>>, vector<1x4x8x32xf32>
    tpu.vector_store %arg4[%c0_7, %c0_8, %c0_9, %c0_10], %3 {strides = array<i32>} : memref<1x4x8x32xf32, #tpu.memory_space<vmem>>, vector<1x4x8x32xf32>,
    return
  }
  func.func @transform_0(%arg0: i32, %arg1: i32) -> (i32, i32, i32, i32) {
    %c0_i32 = arith.constant 0 : i32
    %c0_i32_0 = arith.constant 0 : i32
    %c0_i32_1 = arith.constant 0 : i32
    return %arg0, %arg1, %c0_i32, %c0_i32_0 : i32, i32, i32, i32
  }
  func.func @transform_1(%arg0: i32, %arg1: i32) -> (i32, i32, i32, i32) {
    %c0_i32 = arith.constant 0 : i32
    %c0_i32_0 = arith.constant 0 : i32
    %c0_i32_1 = arith.constant 0 : i32
    %c0_i32_2 = arith.constant 0 : i32
    return %c0_i32, %arg1, %c0_i32_0, %c0_i32_1 : i32, i32, i32, i32
  }
  func.func @transform_2(%arg0: i32, %arg1: i32) -> (i32, i32, i32, i32) {
    %c0_i32 = arith.constant 0 : i32
    %c0_i32_0 = arith.constant 0 : i32
    %c0_i32_1 = arith.constant 0 : i32
    return %arg0, %arg1, %c0_i32, %c0_i32_0 : i32, i32, i32, i32
  }
}

</mosaic_0001>

<llo_original>
// kernel: tpu_custom_call.1
$region0: #{tpu_custom_call.1}
  #allocation0 [shape = 'u32[]', space=smem, size = 0x4, offset = 0x4, fixed_abs, tag = 'smem constant byte address 0x4 - core index']
  #allocation1 [shape = 'u32[144,128]{1,0:T(1,128)}', space=vmem, size = 0x12000, scoped, tag = 'internal scratch']
  %s0 = inlined_call_operand.hbm [shape: f32[2,16,8,32], index: 0, kind: input, shape index: {}]
  %s1 = inlined_call_operand.vmem [shape: f32[1,16,8,1], index: 1, kind: input, shape index: {}]
  %s2 = inlined_call_operand.hbm [shape: f32[2,16,8,32], index: 2, kind: output, shape index: {}]
  %s3 = sld [smem:[#allocation0]]
  $region45: #{tpu_custom_call.1} parent=0
    _
  %s5 = ssub.s32 1, %s3
  %s6 = scalar_select 0, %s5, %s3
  $region1: #{tpu_custom_call.1} parent=0
    #allocation2 [shape = 'u8[32768]{0}', space=vmem, size = 0x8000, scoped, tag = 'input window, operand 0']
    #allocation3 [shape = 's32[2]{0}', space=sflag, size = 0x8, scoped, tag = 'scoped memory for tpu_custom_call.1']
    #allocation4 [shape = 's32[2]{0}', space=sflag, size = 0x8, scoped, tag = 'scoped memory for tpu_custom_call.1']
    #allocation5 [shape = 'u8[32768]{0}', space=vmem, size = 0x8000, scoped, tag = 'output window, operand 0']
    %7 = vsyncpa [#allocation3], 0
    %s8 = scalar_lea.sflag [#allocation3], 1
    %9 = vsyncpa %s8, 0
    %10 = vsyncpa [#allocation4], 0
    %s11 = scalar_lea.sflag [#allocation4], 1
    %12 = vsyncpa %s11, 0
    loop: start=0, step=1, limit=10
    $region2: #{tpu_custom_call.1} parent=1 // loop_pre_header
      _
    $region3: #{tpu_custom_call.1} parent=1 // loop_header
      %s14 = sphi 0, %s18
      %p15 = scmp.ge.s32.totalorder %s14, 10
      %s21 = sphi 0, %s33
      %s22 = sphi 0, %s29
      %s23 = sphi 0, %s21
      %s24 = sphi 0, %s22
      %s25 = sphi 0, %s23
      %s26 = sphi 0, %s24
      %s38 = sphi 0, %s40
      %s41 = sphi 0, %s38
      %s42 = sphi 0, %s41
      %s58 = sphi 0, %s42
      %s64 = sphi 0, %s66
      %s67 = sphi 0, %s64
      %s68 = sphi 0, %s67
      %s84 = sphi 0, %s68
      %s92 = sphi 0, %s94
      %s95 = sphi 0, %s92
      %s96 = sphi 0, %s95
      %s112 = sphi 0, %s96
    $region4: #{tpu_custom_call.1} parent=1 // loop_header_branch
      %17 = sbr.rel (%p15) target = $region8
    $region5: #{tpu_custom_call.1} parent=1 // loop_body
      %s19 = ssub.s32 %s14, 1
      %s20 = ssub.s32 %s14, 2
      %s27 = sadd.s32 1, %s22
      %p28 = scmp.ge.s32.totalorder %s27, 4
      %s29 = scalar_select %p28, 0, %s27
      %s30 = sadd.s32 1, %s21
      %s31 = scalar_select %p28, %s30, %s21
      %p32 = scmp.ge.s32.totalorder %s31, 2
      %s33 = scalar_select %p32, 0, %s31
      %s34 = ssub.s32 %s21, %s33
      %s35 = ssub.s32 %s22, %s29
      %s36 = sor.u32 %s34, %s35
      %p37 = scmp.eq.s32.totalorder %s36, 0
      %s39 = sadd.s32 %s38, 1
      %s40 = scalar_select %p37, %s38, %s39
      %p43 = pneg %p37
      %p44 = scmp.eq.s32.totalorder %s14, 7
      %p45 = por %p43, %p44
      %p46 = scmp.ne.s32.totalorder %s38, %s41
      %p47 = scmp.eq.s32.totalorder %s14, 0
      %p48 = por %p46, %p47
      %p49 = scmp.ne.s32.totalorder %s38, %s41
      %p50 = scmp.eq.s32.totalorder %s19, 7
      %p51 = por %p49, %p50
      %p52 = scmp.ne.s32.totalorder %s41, %s42
      %p53 = scmp.eq.s32.totalorder %s19, 0
      %p54 = por %p52, %p53
      %p55 = scmp.ne.s32.totalorder %s41, %s42
      %p56 = scmp.eq.s32.totalorder %s20, 7
      %p57 = por %p55, %p56
      %p59 = scmp.ne.s32.totalorder %s42, %s58
      %p60 = scmp.eq.s32.totalorder %s20, 0
      %p61 = por %p59, %p60
      %s62 = ssub.s32 %s22, %s29
      %p63 = scmp.eq.s32.totalorder %s62, 0
      %s65 = sadd.s32 %s64, 1
      %s66 = scalar_select %p63, %s64, %s65
      %p69 = pneg %p63
      %p70 = scmp.eq.s32.totalorder %s14, 7
      %p71 = por %p69, %p70
      %p72 = scmp.ne.s32.totalorder %s64, %s67
      %p73 = scmp.eq.s32.totalorder %s14, 0
      %p74 = por %p72, %p73
      %p75 = scmp.ne.s32.totalorder %s64, %s67
      %p76 = scmp.eq.s32.totalorder %s19, 7
      %p77 = por %p75, %p76
      %p78 = scmp.ne.s32.totalorder %s67, %s68
      %p79 = scmp.eq.s32.totalorder %s19, 0
      %p80 = por %p78, %p79
      %p81 = scmp.ne.s32.totalorder %s67, %s68
      %p82 = scmp.eq.s32.totalorder %s20, 7
      %p83 = por %p81, %p82
      %p85 = scmp.ne.s32.totalorder %s68, %s84
      %p86 = scmp.eq.s32.totalorder %s20, 0
      %p87 = por %p85, %p86
      %s88 = ssub.s32 %s21, %s33
      %s89 = ssub.s32 %s22, %s29
      %s90 = sor.u32 %s88, %s89
      %p91 = scmp.eq.s32.totalorder %s90, 0
      %s93 = sadd.s32 %s92, 1
      %s94 = scalar_select %p91, %s92, %s93
      %p97 = pneg %p91
      %p98 = scmp.eq.s32.totalorder %s14, 7
      %p99 = por %p97, %p98
      %p100 = scmp.ne.s32.totalorder %s92, %s95
      %p101 = scmp.eq.s32.totalorder %s14, 0
      %p102 = por %p100, %p101
      %p103 = scmp.ne.s32.totalorder %s92, %s95
      %p104 = scmp.eq.s32.totalorder %s19, 7
      %p105 = por %p103, %p104
      %p106 = scmp.ne.s32.totalorder %s95, %s96
      %p107 = scmp.eq.s32.totalorder %s19, 0
      %p108 = por %p106, %p107
      %p109 = scmp.ne.s32.totalorder %s95, %s96
      %p110 = scmp.eq.s32.totalorder %s20, 7
      %p111 = por %p109, %p110
      %p113 = scmp.ne.s32.totalorder %s96, %s112
      %p114 = scmp.eq.s32.totalorder %s20, 0
      %p115 = por %p113, %p114
      %p116 = scmp.le.s32.totalorder 1, %s14
      %p117 = scmp.lt.s32.totalorder %s14, 9
      %p118 = pnand %p116, %p117
      %p119 = pneg %p118
      // Predicated region
      $region9: #{tpu_custom_call.1} parent=5 // pred_check
        _
      $region10: #{tpu_custom_call.1} parent=5 // pred_check_branch
        %121 = sbr.rel (%p118) target = $region12
      $region11: #{tpu_custom_call.1} parent=5 // pred_region
        %s122 = ssub.s32 %s14, 1
      $region12: #{tpu_custom_call.1} parent=5 // pred_fallthru
        _
      %p123 = scmp.lt.s32.totalorder %s14, 8
      // Predicated region
      $region13: #{tpu_custom_call.1} parent=5 // pred_check
        %p124 = pneg %p123
      $region14: #{tpu_custom_call.1} parent=5 // pred_check_branch
        %126 = sbr.rel (%p124) target = $region16
      $region15: #{tpu_custom_call.1} parent=5 // pred_region
        // Predicated region
        $region17: #{tpu_custom_call.1} parent=15 // pred_check
          %p127 = pneg %p48
        $region18: #{tpu_custom_call.1} parent=15 // pred_check_branch
          %129 = sbr.rel (%p127) target = $region20
        $region19: #{tpu_custom_call.1} parent=15 // pred_region
          %s130 = sand.u32 %s38, 1
          %s131 = scalar_lea.sflag [#allocation3], %s130
          %s132 = sand.u32 %s38, 1
          %s133 = smul.addr %s132, 32
          %s134 = scalar_lea.vmem [#allocation2], %s133
          %s135 = smul.u32 4, %s22
          %s137 = ssub.s32 512, 512
          %138 = vsyncadd %s131, %s137
          %s139 = smul.addr %s21, 16
          %s140 = sadd.s32 %s135, %s139
          %s141 = smul.addr %s140, 128
          %s142 = scalar_lea.hbm %s0, %s141
          %s143 = sshll.u32 %s134, 4
          %s144 = int_to_ptr.vmem [resolvable:$true] %s143
          %149 = dma.hbm_to_vmem [thread:$0]  %s142, 512, %s144, %s131, 128, 128, 8
        $region20: #{tpu_custom_call.1} parent=15 // pred_fallthru
          _
        // Predicated region
        $region21: #{tpu_custom_call.1} parent=15 // pred_check
          %p150 = pneg %p74
        $region22: #{tpu_custom_call.1} parent=15 // pred_check_branch
          %152 = sbr.rel (%p150) target = $region24
        $region23: #{tpu_custom_call.1} parent=15 // pred_region
          %s153 = smul.u32 4, %s22
          %p154 = scmp.lt.s32.totalorder %s153, 15
          %s155 = scalar_select %p154, %s153, 15
          %s156 = smul.addr %s155, 8
          %s157 = scalar_lea.vmem %s1, %s156
          %s158 = smul.u32 4, %s22
        $region24: #{tpu_custom_call.1} parent=15 // pred_fallthru
          _
      $region16: #{tpu_custom_call.1} parent=5 // pred_fallthru
        _
      %p159 = scmp.le.s32.totalorder 1, %s14
      %p160 = scmp.lt.s32.totalorder %s14, 9
      %p161 = pnand %p159, %p160
      %p162 = pneg %p161
      // Predicated region
      $region25: #{tpu_custom_call.1} parent=5 // pred_check
        _
      $region26: #{tpu_custom_call.1} parent=5 // pred_check_branch
        %164 = sbr.rel (%p161) target = $region28
      $region27: #{tpu_custom_call.1} parent=5 // pred_region
        %s165 = ssub.s32 %s14, 1
        %s166 = sand.u32 %s41, 1
        %s167 = scalar_lea.sflag [#allocation3], %s166
        %s168 = sand.u32 %s41, 1
        %s169 = smul.addr %s168, 32
        %s170 = scalar_lea.vmem [#allocation2], %s169
        // Predicated region
        $region29: #{tpu_custom_call.1} parent=27 // pred_check
          %p171 = pneg %p54
        $region30: #{tpu_custom_call.1} parent=27 // pred_check_branch
          %173 = sbr.rel (%p171) target = $region32
        $region31: #{tpu_custom_call.1} parent=27 // pred_region
          %174 = dma.done %s167, 512
        $region32: #{tpu_custom_call.1} parent=27 // pred_fallthru
          _
        %s175 = sand.u32 %s41, 1
        %s176 = scalar_lea.sflag [#allocation3], %s175
        %s177 = sand.u32 %s41, 1
        %s178 = smul.addr %s177, 32
        %s179 = scalar_lea.vmem [#allocation2], %s178
        %p180 = pneg %p54
        %p181 = pneg %p51
        %s182 = smul.u32 4, %s24
        %p183 = scmp.lt.s32.totalorder %s182, 15
        %s184 = scalar_select %p183, %s182, 15
        %s185 = smul.addr %s184, 8
        %s186 = scalar_lea.vmem %s1, %s185
        %p187 = pneg %p80
        %p188 = pneg %p77
        %p189 = pneg %p108
        %p190 = pneg %p105
        %s191 = sand.u32 %s95, 1
        %s192 = scalar_lea.sflag [#allocation4], %s191
        %s193 = sand.u32 %s95, 1
        %s194 = smul.addr %s193, 32
        %s195 = scalar_lea.vmem [#allocation5], %s194
        %s196 = smul.u32 4, %s24
        %s197 = smul.u32 4, %s24
        %p198 = scmp.lt.s32.totalorder %s197, 15
        %s199 = scalar_select %p198, %s197, 15
        %s200 = smul.addr %s199, 8
        %s201 = scalar_lea.vmem %s1, %s200
        %s202 = smul.u32 4, %s24
        %s203 = smul.u32 4, %s24
        %v204 = vld [vmem:[%s170] sm:$0xff]
        %v205 = vld [vmem:[%s170 + $0x8] sm:$0xff]
        %v206 = vld [vmem:[%s170 + $0x10] sm:$0xff]
        %v207 = vld [vmem:[%s170 + $0x18] sm:$0xff]
        %v208 = vld [vmem:[%s201] sm:$0xff]
        %v209 = vld [vmem:[%s201 + $0x8] sm:$0xff]
        %v210 = vld [vmem:[%s201 + $0x10] sm:$0xff]
        %v211 = vld [vmem:[%s201 + $0x18] sm:$0xff]
        %213 = vset.pattern.permute.xlu0 0
        %214 = vperm.xlu0 %213, %v208
        %v215 = vpop.permute.xlu0 %214
        %218 = vset.pattern.permute.xlu0 0
        %219 = vperm.xlu0 %218, %v209
        %v220 = vpop.permute.xlu0 %219
        %223 = vset.pattern.permute.xlu0 0
        %224 = vperm.xlu0 %223, %v210
        %v225 = vpop.permute.xlu0 %224
        %228 = vset.pattern.permute.xlu0 0
        %229 = vperm.xlu0 %228, %v211
        %v230 = vpop.permute.xlu0 %229
        %v232 = vadd.f32 %v204, %v215
        %v233 = vadd.f32 %v205, %v220
        %v234 = vadd.f32 %v206, %v225
        %v235 = vadd.f32 %v207, %v230
        %vm236 = vcmask 261120
        %237 = vst.msk [vmem:[%s195] sm:$0xff] %vm236, %v232
        %238 = vst.msk [vmem:[%s195 + $0x8] sm:$0xff] %vm236, %v233
        %239 = vst.msk [vmem:[%s195 + $0x10] sm:$0xff] %vm236, %v234
        %240 = vst.msk [vmem:[%s195 + $0x18] sm:$0xff] %vm236, %v235
        %s241 = sand.u32 %s95, 1
        %s242 = scalar_lea.sflag [#allocation4], %s241
        %s243 = sand.u32 %s95, 1
        %s244 = smul.addr %s243, 32
        %s245 = scalar_lea.vmem [#allocation5], %s244
        // Predicated region
        $region33: #{tpu_custom_call.1} parent=27 // pred_check
          %p246 = pneg %p105
        $region34: #{tpu_custom_call.1} parent=27 // pred_check_branch
          %248 = sbr.rel (%p246) target = $region36
        $region35: #{tpu_custom_call.1} parent=27 // pred_region
          %s249 = smul.u32 4, %s24
          %s251 = ssub.s32 512, 512
          %252 = vsyncadd %s242, %s251
          %s253 = smul.addr %s23, 16
          %s254 = sadd.s32 %s249, %s253
          %s255 = smul.addr %s254, 128
          %s256 = scalar_lea.hbm %s2, %s255
          %s257 = sshll.u32 %s245, 4
          %s258 = int_to_ptr.vmem [resolvable:$true] %s257
          %263 = dma.vmem_to_hbm [thread:$0]  %s258, 512, %s256, %s242, 128, 128, 8
        $region36: #{tpu_custom_call.1} parent=27 // pred_fallthru
          _
      $region28: #{tpu_custom_call.1} parent=5 // pred_fallthru
        _
      %p264 = scmp.le.s32.totalorder 2, %s14
      // Predicated region
      $region37: #{tpu_custom_call.1} parent=5 // pred_check
        %p265 = pneg %p264
      $region38: #{tpu_custom_call.1} parent=5 // pred_check_branch
        %267 = sbr.rel (%p265) target = $region40
      $region39: #{tpu_custom_call.1} parent=5 // pred_region
        %s268 = ssub.s32 %s14, 2
        // Predicated region
        $region41: #{tpu_custom_call.1} parent=39 // pred_check
          %p269 = pneg %p111
        $region42: #{tpu_custom_call.1} parent=39 // pred_check_branch
          %271 = sbr.rel (%p269) target = $region44
        $region43: #{tpu_custom_call.1} parent=39 // pred_region
          %s272 = sand.u32 %s96, 1
          %s273 = scalar_lea.sflag [#allocation4], %s272
          %s274 = sand.u32 %s96, 1
          %s275 = smul.addr %s274, 32
          %s276 = scalar_lea.vmem [#allocation5], %s275
          %277 = dma.done %s273, 512
        $region44: #{tpu_custom_call.1} parent=39 // pred_fallthru
          _
      $region40: #{tpu_custom_call.1} parent=5 // pred_fallthru
        _
    $region6: #{tpu_custom_call.1} parent=1 // loop_footer
      %s18 = sadd.s32 1, %s14
    $region7: #{tpu_custom_call.1} parent=1 // loop_footer_branch
      %13 = sbr.rel target = $region3
    $region8: #{tpu_custom_call.1} parent=1 // loop_exit
      _
    %278 = vsyncpa [#allocation3], 1
    %s279 = scalar_lea.sflag [#allocation3], 1
    %280 = vsyncpa %s279, 1
    %281 = vsyncpa [#allocation4], 1
    %s282 = scalar_lea.sflag [#allocation4], 1
    %283 = vsyncpa %s282, 1

</llo_original>
